<compile_context>
chip_gen: v5e
topology: v5e:2x2
jax: 0.10.0
libtpu: 0.0.40
codegen_flags: <defaults>
</compile_context>

<pallas_src>
from math import factorial, sqrt as msqrt

import numpy as np
import jax
import jax.numpy as jnp
from jax.experimental import pallas as pl
from jax.experimental.pallas import tpu as pltpu


# ----------------------------------------------------------------------------
# Host-side precompute (equivalent of coo_CG / extract_batch_ptr buffers).
# ----------------------------------------------------------------------------
def clebsch_gordan(l1, m1, l2, m2, l, m):
    """Standard CG coefficient <l1 m1; l2 m2 | l m> (Racah formula)."""
    if m1 + m2 != m:
        return 0.0
    if not (abs(l1 - l2) <= l <= l1 + l2):
        return 0.0
    if abs(m1) > l1 or abs(m2) > l2 or abs(m) > l:
        return 0.0
    pref = msqrt(
        (2 * l + 1)
        * factorial(l + l1 - l2)
        * factorial(l - l1 + l2)
        * factorial(l1 + l2 - l)
        / factorial(l1 + l2 + l + 1)
    )
    pref *= msqrt(
        factorial(l + m) * factorial(l - m)
        * factorial(l1 - m1) * factorial(l1 + m1)
        * factorial(l2 - m2) * factorial(l2 + m2)
    )
    s = 0.0
    for k in range(0, l1 + l2 - l + 1):
        d = [k, l1 + l2 - l - k, l1 - m1 - k, l2 + m2 - k,
             l - l2 + m1 + k, l - l1 - m2 + k]
        if any(v < 0 for v in d):
            continue
        s += (-1.0) ** k / (
            factorial(d[0]) * factorial(d[1]) * factorial(d[2])
            * factorial(d[3]) * factorial(d[4]) * factorial(d[5])
        )
    return pref * s


def num_orders(L):
    lmin, lmax = L
    return (lmax + 1) ** 2 - lmin ** 2


def order_index(L, l, m):
    lmin, _ = L
    return l ** 2 - lmin ** 2 + (m + l)


def build_coo_cg(L_out, L_in1, L_in2):
    """Returns (cg_vals, M, M1, M2, l_ind, num_weights) sorted by output order M."""
    lmin_o, lmax_o = L_out
    lmin1, lmax1 = L_in1
    lmin2, lmax2 = L_in2

    paths = []
    for l in range(lmin_o, lmax_o + 1):
        for l1 in range(lmin1, lmax1 + 1):
            for l2 in range(lmin2, lmax2 + 1):
                if abs(l1 - l2) <= l <= l1 + l2:
                    paths.append((l, l1, l2))
    path_id = {p: i for i, p in enumerate(paths)}

    entries = []  # (M, l1, l2, M1, M2, l_ind, cg)
    for (l, l1, l2), lind in path_id.items():
        for m in range(-l, l + 1):
            for m1 in range(-l1, l1 + 1):
                for m2 in range(-l2, l2 + 1):
                    cg = clebsch_gordan(l1, m1, l2, m2, l, m)
                    if abs(cg) < 1e-12:
                        continue
                    entries.append((order_index(L_out, l, m), l1, l2,
                                    order_index(L_in1, l1, m1),
                                    order_index(L_in2, l2, m2),
                                    lind, cg))
    entries.sort(key=lambda e: (e[0], e[1], e[2], e[3], e[4]))

    M = np.array([e[0] for e in entries], dtype=np.int32)
    M1 = np.array([e[3] for e in entries], dtype=np.int32)
    M2 = np.array([e[4] for e in entries], dtype=np.int32)
    l_ind = np.array([e[5] for e in entries], dtype=np.int32)
    cg_vals = np.array([e[6] for e in entries], dtype=np.float32)
    return cg_vals, M, M1, M2, l_ind, len(paths)


def ceil_to(n, m):
    return ((n + m - 1) // m) * m


# ----------------------------------------------------------------------------
# Pallas kernel: one-hot gather matmuls + VPU product + one-hot scatter matmul.
# Batch is folded into the lane axis (lane = b*C + c), so every tensor is a
# lane-dense (orders, B*C) slab and the grid runs over lane chunks.
# ----------------------------------------------------------------------------
def _cw_kernel(g1_ref, g2_ref, s_ref, x1_ref, x2_ref, w_ref, o_ref):
    prec = jax.lax.Precision.HIGHEST
    x1g = jnp.dot(g1_ref[...], x1_ref[...],
                  preferred_element_type=jnp.float32, precision=prec)   # (NNZp, lane)
    x2g = jnp.dot(g2_ref[...], x2_ref[...],
                  preferred_element_type=jnp.float32, precision=prec)   # (NNZp, lane)
    inter = x1g * x2g * w_ref[...]                                      # VPU, f32
    o_ref[...] = jnp.dot(s_ref[...], inter,
                         preferred_element_type=jnp.float32, precision=prec)


def make_weighted_tensor_product_cw(coo, P1, P2, P_out, C, lane_tile_cap=1024):
    """Builds the one-hot constants once and returns a jitted forward(x1, x2, w)."""
    cg_vals, M, M1, M2, l_ind, _num_weights = coo
    nnz = int(cg_vals.shape[0])
    NNZp = ceil_to(max(nnz, 1), 8)      # minimum multiple-of-8 padding only

    # strictly one-hot gather / scatter matrices (exact in any matmul precision)
    G1 = np.zeros((NNZp, P1), np.float32)
    G1[np.arange(nnz), M1] = 1.0
    G2 = np.zeros((NNZp, P2), np.float32)
    G2[np.arange(nnz), M2] = 1.0
    S = np.zeros((P_out, NNZp), np.float32)
    S[M, np.arange(nnz)] = 1.0

    G1_j, G2_j, S_j = jnp.asarray(G1), jnp.asarray(G2), jnp.asarray(S)
    cg_j = jnp.asarray(cg_vals)                      # (nnz,)
    lind_np = np.asarray(l_ind, dtype=np.int32)      # static gather indices

    cap = max(128, (lane_tile_cap // 128) * 128)

    @jax.jit
    def forward(x1, x2, weight):
        B = x1.shape[0]
        BC = B * C

        # lane tiling: use the full lane extent when it fits (no lane padding);
        # split into >=2 chunks when possible so v7x can shard the grid axis.
        if BC <= cap:
            BCp = BC
            if BC >= 256 and BC % 256 == 0:
                lane_tile = BC // 2          # 2 chunks, each a multiple of 128
            else:
                lane_tile = BC               # single chunk, full-extent block
        else:
            lane_tile = cap
            BCp = ceil_to(BC, lane_tile)
        n_chunks = BCp // lane_tile

        # (orders, B*C) lane-dense layout; fused with the consumer under jit.
        x1_2d = jnp.transpose(x1, (1, 0, 2)).reshape(P1, BC)
        x2_2d = jnp.transpose(x2, (1, 0, 2)).reshape(P2, BC)
        if BCp != BC:
            x1_2d = jnp.pad(x1_2d, ((0, 0), (0, BCp - BC)))
            x2_2d = jnp.pad(x2_2d, ((0, 0), (0, BCp - BC)))

        # per-path weights with CG folded in (tiny static gather in the wrapper)
        w_paths = cg_j[None, :, None] * weight[:, lind_np, :]    # (Bw, nnz, C)
        Bw = weight.shape[0]
        if Bw == 1 and lane_tile % C == 0:
            # channel pattern repeats identically in every lane chunk:
            # one constant (NNZp, lane_tile) tile, DMA'd once.
            w_tile = jnp.tile(w_paths[0], (1, lane_tile // C))   # (nnz, lane_tile)
            w_arr = jnp.zeros((NNZp, lane_tile), jnp.float32).at[:nnz].set(w_tile)
            w_spec = pl.BlockSpec((NNZp, lane_tile), lambda j: (0, 0))
        else:
            # general fallback: full per-lane weight, lane-chunked like x.
            w_b = jnp.broadcast_to(w_paths, (B, nnz, C))
            w_2d = jnp.transpose(w_b, (1, 0, 2)).reshape(nnz, BC)
            w_arr = jnp.zeros((NNZp, BCp), jnp.float32).at[:nnz, :BC].set(w_2d)
            w_spec = pl.BlockSpec((NNZp, lane_tile), lambda j: (0, j))

        # generous-but-tiny VMEM budget (blocks + intermediates, double-buffered)
        blk_bytes = 4 * lane_tile * (2 * (P1 + P2) + 2 * P_out + 5 * NNZp) \
            + 8 * (NNZp * (P1 + P2) + P_out * NNZp)
        vmem_limit = int(min(max(2 * blk_bytes, 32 * 1024 * 1024), 64 * 1024 * 1024))

        out2d = pl.pallas_call(
            _cw_kernel,
            out_shape=jax.ShapeDtypeStruct((P_out, BCp), jnp.float32),
            grid_spec=pltpu.PrefetchScalarGridSpec(
                num_scalar_prefetch=0,
                grid=(n_chunks,),
                in_specs=[
                    # constant index maps -> DMA'd once, not per grid step
                    pl.BlockSpec((NNZp, P1), lambda j: (0, 0)),
                    pl.BlockSpec((NNZp, P2), lambda j: (0, 0)),
                    pl.BlockSpec((P_out, NNZp), lambda j: (0, 0)),
                    # lane-chunked operands
                    pl.BlockSpec((P1, lane_tile), lambda j: (0, j)),
                    pl.BlockSpec((P2, lane_tile), lambda j: (0, j)),
                    w_spec,
                ],
                out_specs=pl.BlockSpec((P_out, lane_tile), lambda j: (0, j)),
            ),
            compiler_params=pltpu.CompilerParams(
                dimension_semantics=("parallel",),
                vmem_limit_bytes=vmem_limit),
        )(G1_j, G2_j, S_j, x1_2d, x2_2d, w_arr)

        # back to the (B, num_orders_out, C) module convention
        out = out2d[:, :BC].reshape(P_out, B, C)
        return jnp.transpose(out, (1, 0, 2))

    return forward


# pure-JAX reference (mirrors _weighted_tensor_product_cw)
def ref_cw(x1, x2, weight, cg_vals, M, M1, M2, l_ind, P_out):
    B, _, C = x1.shape
    x1g = x1[:, M1, :]
    x2g = x2[:, M2, :]
    inter = x2g * x1g * cg_vals[None, :, None]
    wg = weight[:, l_ind, :]
    ret = inter * wg
    out = jnp.zeros((B, P_out, C), jnp.float32).at[:, M, :].add(ret)
    return out


if __name__ == "__main__":
    # Module config: L_in1=(0,1), L_in2=(0,1), L_out=(0,2),
    # in1_channels=in2_channels=32, channel_wise=True, connected=False ('cw').
    L_in1, L_in2, L_out = (0, 1), (0, 1), (0, 2)
    C = 32
    B = 2

    coo = build_coo_cg(L_out, L_in1, L_in2)
    cg_vals, M, M1, M2, l_ind, num_weights = coo
    P1, P2, P_out = num_orders(L_in1), num_orders(L_in2), num_orders(L_out)

    tp_forward = make_weighted_tensor_product_cw(coo, P1, P2, P_out, C)

    key = jax.random.PRNGKey(0)
    k1, k2, kw = jax.random.split(key, 3)
    x1 = jax.random.normal(k1, (B, P1, C), jnp.float32)
    x2 = jax.random.normal(k2, (B, P2, C), jnp.float32)
    # internal weight init: torch.randn(1, num_weights, in_channels)
    weight = jax.random.normal(kw, (1, num_weights, C), jnp.float32)

    out = jax.block_until_ready(tp_forward(x1, x2, weight))

    expected = ref_cw(x1, x2, weight, jnp.asarray(cg_vals), jnp.asarray(M),
                      jnp.asarray(M1), jnp.asarray(M2), jnp.asarray(l_ind),
                      P_out)
    np.testing.assert_allclose(np.asarray(out), np.asarray(expected),
                               rtol=1e-5, atol=1e-5)
    print("KERNEL_OK")
</pallas_src>

<mosaic_0001>
module attributes {stable_mosaic.version = 11 : i64} {
  func.func @_cw_kernel(%arg0: i32, %arg1: memref<32x4xf32, #tpu.memory_space<vmem>>, %arg2: memref<32x4xf32, #tpu.memory_space<vmem>>, %arg3: memref<9x32xf32, #tpu.memory_space<vmem>>, %arg4: memref<4x64xf32, #tpu.memory_space<vmem>>, %arg5: memref<4x64xf32, #tpu.memory_space<vmem>>, %arg6: memref<32x64xf32, #tpu.memory_space<vmem>>, %arg7: memref<9x64xf32, #tpu.memory_space<vmem>>) attributes {dimension_semantics = [#tpu.dimension_semantics<parallel>], iteration_bounds = array<i64: 1>, scalar_prefetch = 0 : i64, scratch_operands = 0 : i64, tpu.core_type = #tpu.core_type<tc>, window_params = [{pipeline_mode = #tpu.pipeline_mode<synchronous>, transform_indices = @transform_0, window_bounds = array<i64: 32, 4>}, {pipeline_mode = #tpu.pipeline_mode<synchronous>, transform_indices = @transform_1, window_bounds = array<i64: 32, 4>}, {pipeline_mode = #tpu.pipeline_mode<synchronous>, transform_indices = @transform_2, window_bounds = array<i64: 9, 32>}, {transform_indices = @transform_3, window_bounds = array<i64: 4, 64>}, {transform_indices = @transform_4, window_bounds = array<i64: 4, 64>}, {pipeline_mode = #tpu.pipeline_mode<synchronous>, transform_indices = @transform_5, window_bounds = array<i64: 32, 64>}, {transform_indices = @transform_6, window_bounds = array<i64: 9, 64>}]} {
    %c0 = arith.constant 0 : index
    %c0_0 = arith.constant 0 : index
    %0 = vector.load %arg1[%c0, %c0_0] : memref<32x4xf32, #tpu.memory_space<vmem>>, vector<32x4xf32>
    %c0_1 = arith.constant 0 : index
    %c0_2 = arith.constant 0 : index
    %1 = vector.load %arg4[%c0_1, %c0_2] : memref<4x64xf32, #tpu.memory_space<vmem>>, vector<4x64xf32>
    %cst = arith.constant dense<0.000000e+00> : vector<32x64xf32>
    %2 = tpu.matmul %0, %1, %cst {dimension_numbers = #tpu.dot_dimension_numbers<[1], [0], [0], [1], [0, 0, 1, 1], [], []>, precision = #tpu.contract_precision<fp32>} : vector<32x4xf32>, vector<4x64xf32>, vector<32x64xf32> -> vector<32x64xf32>
    %c0_3 = arith.constant 0 : index
    %c0_4 = arith.constant 0 : index
    %3 = vector.load %arg2[%c0_3, %c0_4] : memref<32x4xf32, #tpu.memory_space<vmem>>, vector<32x4xf32>
    %c0_5 = arith.constant 0 : index
    %c0_6 = arith.constant 0 : index
    %4 = vector.load %arg5[%c0_5, %c0_6] : memref<4x64xf32, #tpu.memory_space<vmem>>, vector<4x64xf32>
    %cst_7 = arith.constant dense<0.000000e+00> : vector<32x64xf32>
    %5 = tpu.matmul %3, %4, %cst_7 {dimension_numbers = #tpu.dot_dimension_numbers<[1], [0], [0], [1], [0, 0, 1, 1], [], []>, precision = #tpu.contract_precision<fp32>} : vector<32x4xf32>, vector<4x64xf32>, vector<32x64xf32> -> vector<32x64xf32>
    %6 = arith.mulf %2, %5 : vector<32x64xf32>
    %c0_8 = arith.constant 0 : index
    %c0_9 = arith.constant 0 : index
    %7 = vector.load %arg6[%c0_8, %c0_9] : memref<32x64xf32, #tpu.memory_space<vmem>>, vector<32x64xf32>
    %8 = arith.mulf %6, %7 : vector<32x64xf32>
    %c0_10 = arith.constant 0 : index
    %c0_11 = arith.constant 0 : index
    %9 = vector.load %arg3[%c0_10, %c0_11] : memref<9x32xf32, #tpu.memory_space<vmem>>, vector<9x32xf32>
    %cst_12 = arith.constant dense<0.000000e+00> : vector<9x64xf32>
    %10 = tpu.matmul %9, %8, %cst_12 {dimension_numbers = #tpu.dot_dimension_numbers<[1], [0], [0], [1], [0, 0, 1, 1], [], []>, precision = #tpu.contract_precision<fp32>} : vector<9x32xf32>, vector<32x64xf32>, vector<9x64xf32> -> vector<9x64xf32>
    %c0_13 = arith.constant 0 : index
    %c0_14 = arith.constant 0 : index
    %11 = vector.load %arg7[%c0_13, %c0_14] : memref<9x64xf32, #tpu.memory_space<vmem>>, vector<9x64xf32>
    tpu.vector_store %arg7[%c0_13, %c0_14], %10 {strides = array<i32>} : memref<9x64xf32, #tpu.memory_space<vmem>>, vector<9x64xf32>,
    return
  }
  func.func @transform_0(%arg0: i32) -> (i32, i32) {
    %c0_i32 = arith.constant 0 : i32
    %c0_i32_0 = arith.constant 0 : i32
    %c0_i32_1 = arith.constant 0 : i32
    return %c0_i32, %c0_i32_0 : i32, i32
  }
  func.func @transform_1(%arg0: i32) -> (i32, i32) {
    %c0_i32 = arith.constant 0 : i32
    %c0_i32_0 = arith.constant 0 : i32
    %c0_i32_1 = arith.constant 0 : i32
    return %c0_i32, %c0_i32_0 : i32, i32
  }
  func.func @transform_2(%arg0: i32) -> (i32, i32) {
    %c0_i32 = arith.constant 0 : i32
    %c0_i32_0 = arith.constant 0 : i32
    %c0_i32_1 = arith.constant 0 : i32
    return %c0_i32, %c0_i32_0 : i32, i32
  }
  func.func @transform_3(%arg0: i32) -> (i32, i32) {
    %c0_i32 = arith.constant 0 : i32
    %c0_i32_0 = arith.constant 0 : i32
    return %c0_i32, %arg0 : i32, i32
  }
  func.func @transform_4(%arg0: i32) -> (i32, i32) {
    %c0_i32 = arith.constant 0 : i32
    %c0_i32_0 = arith.constant 0 : i32
    return %c0_i32, %arg0 : i32, i32
  }
  func.func @transform_5(%arg0: i32) -> (i32, i32) {
    %c0_i32 = arith.constant 0 : i32
    %c0_i32_0 = arith.constant 0 : i32
    %c0_i32_1 = arith.constant 0 : i32
    return %c0_i32, %c0_i32_0 : i32, i32
  }
  func.func @transform_6(%arg0: i32) -> (i32, i32) {
    %c0_i32 = arith.constant 0 : i32
    %c0_i32_0 = arith.constant 0 : i32
    return %c0_i32, %arg0 : i32, i32
  }
}

</mosaic_0001>

<llo_original>
// kernel: forward.1
$region0: #{forward.1}
  #allocation0 [shape = 'u32[]', space=smem, size = 0x4, offset = 0x4, fixed_abs, tag = 'smem constant byte address 0x4 - core index']
  #allocation1 [shape = 'u32[72,128]{1,0:T(1,128)}', space=vmem, size = 0x9000, scoped, tag = 'internal scratch']
  %s0 = inlined_call_operand.vmem [shape: f32[32,4], index: 0, kind: input, shape index: {}]
  %s1 = inlined_call_operand.vmem [shape: f32[32,4], index: 1, kind: input, shape index: {}]
  %s2 = inlined_call_operand.vmem [shape: f32[9,32], index: 2, kind: input, shape index: {}]
  %s3 = inlined_call_operand.vmem [shape: f32[4,64], index: 3, kind: input, shape index: {}]
  %s4 = inlined_call_operand.vmem [shape: f32[4,64], index: 4, kind: input, shape index: {}]
  %s5 = inlined_call_operand.vmem [shape: f32[32,64], index: 5, kind: input, shape index: {}]
  %s6 = inlined_call_operand.vmem [shape: f32[9,64], index: 6, kind: output, shape index: {}]
  %s7 = sld [smem:[#allocation0]]
  $region34: #{forward.1} parent=0
    _
  %s9 = ssub.s32 1, %s7
  %s10 = scalar_select 0, %s9, %s7
  // Predicated region
  $region2: #{forward.1} parent=0 // pred_check
    _
  $region3: #{forward.1} parent=0 // pred_check_branch
    %12 = sbr.rel (0) target = $region5
  $region4: #{forward.1} parent=0 // pred_region
    _
  $region5: #{forward.1} parent=0 // pred_fallthru
    _
  // Predicated region
  $region6: #{forward.1} parent=0 // pred_check
    _
  $region7: #{forward.1} parent=0 // pred_check_branch
    %14 = sbr.rel (0) target = $region9
  $region8: #{forward.1} parent=0 // pred_region
    _
  $region9: #{forward.1} parent=0 // pred_fallthru
    _
  // Predicated region
  $region10: #{forward.1} parent=0 // pred_check
    _
  $region11: #{forward.1} parent=0 // pred_check_branch
    %16 = sbr.rel (0) target = $region13
  $region12: #{forward.1} parent=0 // pred_region
    _
  $region13: #{forward.1} parent=0 // pred_fallthru
    _
  // Predicated region
  $region14: #{forward.1} parent=0 // pred_check
    _
  $region15: #{forward.1} parent=0 // pred_check_branch
    %18 = sbr.rel (0) target = $region17
  $region16: #{forward.1} parent=0 // pred_region
    _
  $region17: #{forward.1} parent=0 // pred_fallthru
    _
  // Predicated region
  $region18: #{forward.1} parent=0 // pred_check
    _
  $region19: #{forward.1} parent=0 // pred_check_branch
    %20 = sbr.rel (0) target = $region21
  $region20: #{forward.1} parent=0 // pred_region
    _
  $region21: #{forward.1} parent=0 // pred_fallthru
    _
  // Predicated region
  $region22: #{forward.1} parent=0 // pred_check
    _
  $region23: #{forward.1} parent=0 // pred_check_branch
    %22 = sbr.rel (0) target = $region25
  $region24: #{forward.1} parent=0 // pred_region
    _
  $region25: #{forward.1} parent=0 // pred_fallthru
    _
  %v23 = vld [vmem:[%s0] sm:$0xff]
  %v24 = vld [vmem:[%s0 + $0x8] sm:$0xff]
  %v25 = vld [vmem:[%s0 + $0x10] sm:$0xff]
  %v26 = vld [vmem:[%s0 + $0x18] sm:$0xff]
  %v27 = vld [vmem:[%s3] sm:$0xf]
  %vm28 = vcmask 31744
  %v30 = vsel %vm28, %v23, 0
  %v33 = vsel %vm28, %v24, 0
  %v36 = vsel %vm28, %v25, 0
  %v39 = vsel %vm28, %v26, 0
  %vm41 = vcmask 1043456
  %v43 = vsel %vm41, %v27, 0
  %45 = vmatpush.msra.mxu0 0.0
  %46 = vmatpush.msra.mxu0 0.0
  %47 = vmatpush.msra.mxu0 0.0
  %48 = vmatpush.msra.mxu0 0.0
  %49 = vmatpush.msra.mxu0 0.0
  %50 = vmatpush.msra.mxu0 0.0
  %51 = vmatpush.msra.mxu0 0.0
  %52 = vmatpush.msra.mxu0 0.0
  %53 = vmatpush.msra.mxu0 0.0
  %54 = vmatpush.msra.mxu0 0.0
  %55 = vmatpush.msra.mxu0 0.0
  %56 = vmatpush.msra.mxu0 0.0
  %57 = vmatpush.msra.mxu0 0.0
  %58 = vmatpush.msra.mxu0 0.0
  %59 = vmatpush.msra.mxu0 0.0
  %v60 = vand.u32 %v43, 4294901760
  %61 = vmatpush.msra.mxu0 %v60
  %v62 = vand.u32 %v30, 4294901760
  %v63 = vsub.f32 %v30, %v62
  %v64 = vand.u32 %v63, 4294901760
  %v65 = vsub.f32 %v63, %v64
  %v66 = vand.u32 %v65, 4294901760
  %67 = vmatmul.f32.gmra.mxu0 %v66
  %v68 = vpop.f32.mrf.mxu0
  %v69 = vadd.f32 0.0, %v68
  %v70 = vand.u32 %v33, 4294901760
  %v71 = vsub.f32 %v33, %v70
  %v72 = vand.u32 %v71, 4294901760
  %v73 = vsub.f32 %v71, %v72
  %v74 = vand.u32 %v73, 4294901760
  %75 = vmatmul.f32.gmra.mxu0 %v74
  %v76 = vpop.f32.mrf.mxu0
  %v77 = vadd.f32 0.0, %v76
  %v78 = vand.u32 %v36, 4294901760
  %v79 = vsub.f32 %v36, %v78
  %v80 = vand.u32 %v79, 4294901760
  %v81 = vsub.f32 %v79, %v80
  %v82 = vand.u32 %v81, 4294901760
  %83 = vmatmul.f32.gmra.mxu0 %v82
  %v84 = vpop.f32.mrf.mxu0
  %v85 = vadd.f32 0.0, %v84
  %v86 = vand.u32 %v39, 4294901760
  %v87 = vsub.f32 %v39, %v86
  %v88 = vand.u32 %v87, 4294901760
  %v89 = vsub.f32 %v87, %v88
  %v90 = vand.u32 %v89, 4294901760
  %91 = vmatmul.f32.gmra.mxu0 %v90
  %v92 = vpop.f32.mrf.mxu0
  %v93 = vadd.f32 0.0, %v92
  %94 = vdwg.mxu0
  %95 = vmatpush.msra.mxu0 0.0
  %96 = vmatpush.msra.mxu0 0.0
  %97 = vmatpush.msra.mxu0 0.0
  %98 = vmatpush.msra.mxu0 0.0
  %99 = vmatpush.msra.mxu0 0.0
  %100 = vmatpush.msra.mxu0 0.0
  %101 = vmatpush.msra.mxu0 0.0
  %102 = vmatpush.msra.mxu0 0.0
  %103 = vmatpush.msra.mxu0 0.0
  %104 = vmatpush.msra.mxu0 0.0
  %105 = vmatpush.msra.mxu0 0.0
  %106 = vmatpush.msra.mxu0 0.0
  %107 = vmatpush.msra.mxu0 0.0
  %108 = vmatpush.msra.mxu0 0.0
  %109 = vmatpush.msra.mxu0 0.0
  %v110 = vand.u32 %v43, 4294901760
  %v111 = vsub.f32 %v43, %v110
  %v112 = vand.u32 %v111, 4294901760
  %v113 = vsub.f32 %v111, %v112
  %v114 = vand.u32 %v113, 4294901760
  %115 = vmatpush.msra.mxu0 %v114
  %v116 = vand.u32 %v30, 4294901760
  %117 = vmatmul.f32.gmra.mxu0 %v116
  %v118 = vpop.f32.mrf.mxu0
  %v119 = vadd.f32 %v69, %v118
  %v120 = vand.u32 %v33, 4294901760
  %121 = vmatmul.f32.gmra.mxu0 %v120
  %v122 = vpop.f32.mrf.mxu0
  %v123 = vadd.f32 %v77, %v122
  %v124 = vand.u32 %v36, 4294901760
  %125 = vmatmul.f32.gmra.mxu0 %v124
  %v126 = vpop.f32.mrf.mxu0
  %v127 = vadd.f32 %v85, %v126
  %v128 = vand.u32 %v39, 4294901760
  %129 = vmatmul.f32.gmra.mxu0 %v128
  %v130 = vpop.f32.mrf.mxu0
  %v131 = vadd.f32 %v93, %v130
  %132 = vdwg.mxu0
  %133 = vmatpush.msra.mxu0 0.0
  %134 = vmatpush.msra.mxu0 0.0
  %135 = vmatpush.msra.mxu0 0.0
  %136 = vmatpush.msra.mxu0 0.0
  %137 = vmatpush.msra.mxu0 0.0
  %138 = vmatpush.msra.mxu0 0.0
  %139 = vmatpush.msra.mxu0 0.0
  %140 = vmatpush.msra.mxu0 0.0
  %141 = vmatpush.msra.mxu0 0.0
  %142 = vmatpush.msra.mxu0 0.0
  %143 = vmatpush.msra.mxu0 0.0
  %144 = vmatpush.msra.mxu0 0.0
  %145 = vmatpush.msra.mxu0 0.0
  %146 = vmatpush.msra.mxu0 0.0
  %147 = vmatpush.msra.mxu0 0.0
  %v148 = vand.u32 %v43, 4294901760
  %v149 = vsub.f32 %v43, %v148
  %150 = vmatpush.msra.mxu0 %v149
  %v151 = vand.u32 %v30, 4294901760
  %v152 = vsub.f32 %v30, %v151
  %153 = vmatmul.f32.gmra.mxu0 %v152
  %v154 = vpop.f32.mrf.mxu0
  %v155 = vadd.f32 %v119, %v154
  %v156 = vand.u32 %v33, 4294901760
  %v157 = vsub.f32 %v33, %v156
  %158 = vmatmul.f32.gmra.mxu0 %v157
  %v159 = vpop.f32.mrf.mxu0
  %v160 = vadd.f32 %v123, %v159
  %v161 = vand.u32 %v36, 4294901760
  %v162 = vsub.f32 %v36, %v161
  %163 = vmatmul.f32.gmra.mxu0 %v162
  %v164 = vpop.f32.mrf.mxu0
  %v165 = vadd.f32 %v127, %v164
  %v166 = vand.u32 %v39, 4294901760
  %v167 = vsub.f32 %v39, %v166
  %168 = vmatmul.f32.gmra.mxu0 %v167
  %v169 = vpop.f32.mrf.mxu0
  %v170 = vadd.f32 %v131, %v169
  %171 = vdwg.mxu0
  %172 = vmatpush.msra.mxu0 0.0
  %173 = vmatpush.msra.mxu0 0.0
  %174 = vmatpush.msra.mxu0 0.0
  %175 = vmatpush.msra.mxu0 0.0
  %176 = vmatpush.msra.mxu0 0.0
  %177 = vmatpush.msra.mxu0 0.0
  %178 = vmatpush.msra.mxu0 0.0
  %179 = vmatpush.msra.mxu0 0.0
  %180 = vmatpush.msra.mxu0 0.0
  %181 = vmatpush.msra.mxu0 0.0
  %182 = vmatpush.msra.mxu0 0.0
  %183 = vmatpush.msra.mxu0 0.0
  %184 = vmatpush.msra.mxu0 0.0
  %185 = vmatpush.msra.mxu0 0.0
  %186 = vmatpush.msra.mxu0 0.0
  %v187 = vand.u32 %v43, 4294901760
  %188 = vmatpush.msra.mxu0 %v187
  %v189 = vand.u32 %v30, 4294901760
  %v190 = vsub.f32 %v30, %v189
  %v191 = vand.u32 %v190, 4294901760
  %192 = vmatmul.f32.gmra.mxu0 %v191
  %v193 = vpop.f32.mrf.mxu0
  %v194 = vadd.f32 %v155, %v193
  %v195 = vand.u32 %v33, 4294901760
  %v196 = vsub.f32 %v33, %v195
  %v197 = vand.u32 %v196, 4294901760
  %198 = vmatmul.f32.gmra.mxu0 %v197
  %v199 = vpop.f32.mrf.mxu0
  %v200 = vadd.f32 %v160, %v199
  %v201 = vand.u32 %v36, 4294901760
  %v202 = vsub.f32 %v36, %v201
  %v203 = vand.u32 %v202, 4294901760
  %204 = vmatmul.f32.gmra.mxu0 %v203
  %v205 = vpop.f32.mrf.mxu0
  %v206 = vadd.f32 %v165, %v205
  %v207 = vand.u32 %v39, 4294901760
  %v208 = vsub.f32 %v39, %v207
  %v209 = vand.u32 %v208, 4294901760
  %210 = vmatmul.f32.gmra.mxu0 %v209
  %v211 = vpop.f32.mrf.mxu0
  %v212 = vadd.f32 %v170, %v211
  %213 = vdwg.mxu0
  %214 = vmatpush.msra.mxu0 0.0
  %215 = vmatpush.msra.mxu0 0.0
  %216 = vmatpush.msra.mxu0 0.0
  %217 = vmatpush.msra.mxu0 0.0
  %218 = vmatpush.msra.mxu0 0.0
  %219 = vmatpush.msra.mxu0 0.0
  %220 = vmatpush.msra.mxu0 0.0
  %221 = vmatpush.msra.mxu0 0.0
  %222 = vmatpush.msra.mxu0 0.0
  %223 = vmatpush.msra.mxu0 0.0
  %224 = vmatpush.msra.mxu0 0.0
  %225 = vmatpush.msra.mxu0 0.0
  %226 = vmatpush.msra.mxu0 0.0
  %227 = vmatpush.msra.mxu0 0.0
  %228 = vmatpush.msra.mxu0 0.0
  %v229 = vand.u32 %v43, 4294901760
  %v230 = vsub.f32 %v43, %v229
  %v231 = vand.u32 %v230, 4294901760
  %232 = vmatpush.msra.mxu0 %v231
  %v233 = vand.u32 %v30, 4294901760
  %234 = vmatmul.f32.gmra.mxu0 %v233
  %v235 = vpop.f32.mrf.mxu0
  %v236 = vadd.f32 %v194, %v235
  %v237 = vand.u32 %v33, 4294901760
  %238 = vmatmul.f32.gmra.mxu0 %v237
  %v239 = vpop.f32.mrf.mxu0
  %v240 = vadd.f32 %v200, %v239
  %v241 = vand.u32 %v36, 4294901760
  %242 = vmatmul.f32.gmra.mxu0 %v241
  %v243 = vpop.f32.mrf.mxu0
  %v244 = vadd.f32 %v206, %v243
  %v245 = vand.u32 %v39, 4294901760
  %246 = vmatmul.f32.gmra.mxu0 %v245
  %v247 = vpop.f32.mrf.mxu0
  %v248 = vadd.f32 %v212, %v247
  %249 = vdwg.mxu0
  %250 = vmatpush.msra.mxu0 0.0
  %251 = vmatpush.msra.mxu0 0.0
  %252 = vmatpush.msra.mxu0 0.0
  %253 = vmatpush.msra.mxu0 0.0
  %254 = vmatpush.msra.mxu0 0.0
  %255 = vmatpush.msra.mxu0 0.0
  %256 = vmatpush.msra.mxu0 0.0
  %257 = vmatpush.msra.mxu0 0.0
  %258 = vmatpush.msra.mxu0 0.0
  %259 = vmatpush.msra.mxu0 0.0
  %260 = vmatpush.msra.mxu0 0.0
  %261 = vmatpush.msra.mxu0 0.0
  %262 = vmatpush.msra.mxu0 0.0
  %263 = vmatpush.msra.mxu0 0.0
  %264 = vmatpush.msra.mxu0 0.0
  %v265 = vand.u32 %v43, 4294901760
  %266 = vmatpush.msra.mxu0 %v265
  %v267 = vand.u32 %v30, 4294901760
  %268 = vmatmul.f32.gmra.mxu0 %v267
  %v269 = vpop.f32.mrf.mxu0
  %v270 = vadd.f32 %v236, %v269
  %v271 = vand.u32 %v33, 4294901760
  %272 = vmatmul.f32.gmra.mxu0 %v271
  %v273 = vpop.f32.mrf.mxu0
  %v274 = vadd.f32 %v240, %v273
  %v275 = vand.u32 %v36, 4294901760
  %276 = vmatmul.f32.gmra.mxu0 %v275
  %v277 = vpop.f32.mrf.mxu0
  %v278 = vadd.f32 %v244, %v277
  %v279 = vand.u32 %v39, 4294901760
  %280 = vmatmul.f32.gmra.mxu0 %v279
  %v281 = vpop.f32.mrf.mxu0
  %v282 = vadd.f32 %v248, %v281
  %283 = vdwg.mxu0
  %v284 = vld [vmem:[%s1] sm:$0xff]
  %v285 = vld [vmem:[%s1 + $0x8] sm:$0xff]
  %v286 = vld [vmem:[%s1 + $0x10] sm:$0xff]
  %v287 = vld [vmem:[%s1 + $0x18] sm:$0xff]
  %v288 = vld [vmem:[%s4] sm:$0xf]
  %v290 = vsel %vm28, %v284, 0
  %v293 = vsel %vm28, %v285, 0
  %v296 = vsel %vm28, %v286, 0
  %v299 = vsel %vm28, %v287, 0
  %v302 = vsel %vm41, %v288, 0
  %304 = vmatpush.msra.mxu0 0.0
  %305 = vmatpush.msra.mxu0 0.0
  %306 = vmatpush.msra.mxu0 0.0
  %307 = vmatpush.msra.mxu0 0.0
  %308 = vmatpush.msra.mxu0 0.0
  %309 = vmatpush.msra.mxu0 0.0
  %310 = vmatpush.msra.mxu0 0.0
  %311 = vmatpush.msra.mxu0 0.0
  %312 = vmatpush.msra.mxu0 0.0
  %313 = vmatpush.msra.mxu0 0.0
  %314 = vmatpush.msra.mxu0 0.0
  %315 = vmatpush.msra.mxu0 0.0
  %316 = vmatpush.msra.mxu0 0.0
  %317 = vmatpush.msra.mxu0 0.0
  %318 = vmatpush.msra.mxu0 0.0
  %v319 = vand.u32 %v302, 4294901760
  %320 = vmatpush.msra.mxu0 %v319
  %v321 = vand.u32 %v290, 4294901760
  %v322 = vsub.f32 %v290, %v321
  %v323 = vand.u32 %v322, 4294901760
  %v324 = vsub.f32 %v322, %v323
  %v325 = vand.u32 %v324, 4294901760
  %326 = vmatmul.f32.gmra.mxu0 %v325
  %v327 = vpop.f32.mrf.mxu0
  %v328 = vadd.f32 0.0, %v327
  %v329 = vand.u32 %v293, 4294901760
  %v330 = vsub.f32 %v293, %v329
  %v331 = vand.u32 %v330, 4294901760
  %v332 = vsub.f32 %v330, %v331
  %v333 = vand.u32 %v332, 4294901760
  %334 = vmatmul.f32.gmra.mxu0 %v333
  %v335 = vpop.f32.mrf.mxu0
  %v336 = vadd.f32 0.0, %v335
  %v337 = vand.u32 %v296, 4294901760
  %v338 = vsub.f32 %v296, %v337
  %v339 = vand.u32 %v338, 4294901760
  %v340 = vsub.f32 %v338, %v339
  %v341 = vand.u32 %v340, 4294901760
  %342 = vmatmul.f32.gmra.mxu0 %v341
  %v343 = vpop.f32.mrf.mxu0
  %v344 = vadd.f32 0.0, %v343
  %v345 = vand.u32 %v299, 4294901760
  %v346 = vsub.f32 %v299, %v345
  %v347 = vand.u32 %v346, 4294901760
  %v348 = vsub.f32 %v346, %v347
  %v349 = vand.u32 %v348, 4294901760
  %350 = vmatmul.f32.gmra.mxu0 %v349
  %v351 = vpop.f32.mrf.mxu0
  %v352 = vadd.f32 0.0, %v351
  %353 = vdwg.mxu0
  %354 = vmatpush.msra.mxu0 0.0
  %355 = vmatpush.msra.mxu0 0.0
  %356 = vmatpush.msra.mxu0 0.0
  %357 = vmatpush.msra.mxu0 0.0
  %358 = vmatpush.msra.mxu0 0.0
  %359 = vmatpush.msra.mxu0 0.0
  %360 = vmatpush.msra.mxu0 0.0
  %361 = vmatpush.msra.mxu0 0.0
  %362 = vmatpush.msra.mxu0 0.0
  %363 = vmatpush.msra.mxu0 0.0
  %364 = vmatpush.msra.mxu0 0.0
  %365 = vmatpush.msra.mxu0 0.0
  %366 = vmatpush.msra.mxu0 0.0
  %367 = vmatpush.msra.mxu0 0.0
  %368 = vmatpush.msra.mxu0 0.0
  %v369 = vand.u32 %v302, 4294901760
  %v370 = vsub.f32 %v302, %v369
  %v371 = vand.u32 %v370, 4294901760
  %v372 = vsub.f32 %v370, %v371
  %v373 = vand.u32 %v372, 4294901760
  %374 = vmatpush.msra.mxu0 %v373
  %v375 = vand.u32 %v290, 4294901760
  %376 = vmatmul.f32.gmra.mxu0 %v375
  %v377 = vpop.f32.mrf.mxu0
  %v378 = vadd.f32 %v328, %v377
  %v379 = vand.u32 %v293, 4294901760
  %380 = vmatmul.f32.gmra.mxu0 %v379
  %v381 = vpop.f32.mrf.mxu0
  %v382 = vadd.f32 %v336, %v381
  %v383 = vand.u32 %v296, 4294901760
  %384 = vmatmul.f32.gmra.mxu0 %v383
  %v385 = vpop.f32.mrf.mxu0
  %v386 = vadd.f32 %v344, %v385
  %v387 = vand.u32 %v299, 4294901760
  %388 = vmatmul.f32.gmra.mxu0 %v387
  %v389 = vpop.f32.mrf.mxu0
  %v390 = vadd.f32 %v352, %v389
  %391 = vdwg.mxu0
  %392 = vmatpush.msra.mxu0 0.0
  %393 = vmatpush.msra.mxu0 0.0
  %394 = vmatpush.msra.mxu0 0.0
  %395 = vmatpush.msra.mxu0 0.0
  %396 = vmatpush.msra.mxu0 0.0
  %397 = vmatpush.msra.mxu0 0.0
  %398 = vmatpush.msra.mxu0 0.0
  %399 = vmatpush.msra.mxu0 0.0
  %400 = vmatpush.msra.mxu0 0.0
  %401 = vmatpush.msra.mxu0 0.0
  %402 = vmatpush.msra.mxu0 0.0
  %403 = vmatpush.msra.mxu0 0.0
  %404 = vmatpush.msra.mxu0 0.0
  %405 = vmatpush.msra.mxu0 0.0
  %406 = vmatpush.msra.mxu0 0.0
  %v407 = vand.u32 %v302, 4294901760
  %v408 = vsub.f32 %v302, %v407
  %409 = vmatpush.msra.mxu0 %v408
  %v410 = vand.u32 %v290, 4294901760
  %v411 = vsub.f32 %v290, %v410
  %412 = vmatmul.f32.gmra.mxu0 %v411
  %v413 = vpop.f32.mrf.mxu0
  %v414 = vadd.f32 %v378, %v413
  %v415 = vand.u32 %v293, 4294901760
  %v416 = vsub.f32 %v293, %v415
  %417 = vmatmul.f32.gmra.mxu0 %v416
  %v418 = vpop.f32.mrf.mxu0
  %v419 = vadd.f32 %v382, %v418
  %v420 = vand.u32 %v296, 4294901760
  %v421 = vsub.f32 %v296, %v420
  %422 = vmatmul.f32.gmra.mxu0 %v421
  %v423 = vpop.f32.mrf.mxu0
  %v424 = vadd.f32 %v386, %v423
  %v425 = vand.u32 %v299, 4294901760
  %v426 = vsub.f32 %v299, %v425
  %427 = vmatmul.f32.gmra.mxu0 %v426
  %v428 = vpop.f32.mrf.mxu0
  %v429 = vadd.f32 %v390, %v428
  %430 = vdwg.mxu0
  %431 = vmatpush.msra.mxu0 0.0
  %432 = vmatpush.msra.mxu0 0.0
  %433 = vmatpush.msra.mxu0 0.0
  %434 = vmatpush.msra.mxu0 0.0
  %435 = vmatpush.msra.mxu0 0.0
  %436 = vmatpush.msra.mxu0 0.0
  %437 = vmatpush.msra.mxu0 0.0
  %438 = vmatpush.msra.mxu0 0.0
  %439 = vmatpush.msra.mxu0 0.0
  %440 = vmatpush.msra.mxu0 0.0
  %441 = vmatpush.msra.mxu0 0.0
  %442 = vmatpush.msra.mxu0 0.0
  %443 = vmatpush.msra.mxu0 0.0
  %444 = vmatpush.msra.mxu0 0.0
  %445 = vmatpush.msra.mxu0 0.0
  %v446 = vand.u32 %v302, 4294901760
  %447 = vmatpush.msra.mxu0 %v446
  %v448 = vand.u32 %v290, 4294901760
  %v449 = vsub.f32 %v290, %v448
  %v450 = vand.u32 %v449, 4294901760
  %451 = vmatmul.f32.gmra.mxu0 %v450
  %v452 = vpop.f32.mrf.mxu0
  %v453 = vadd.f32 %v414, %v452
  %v454 = vand.u32 %v293, 4294901760
  %v455 = vsub.f32 %v293, %v454
  %v456 = vand.u32 %v455, 4294901760
  %457 = vmatmul.f32.gmra.mxu0 %v456
  %v458 = vpop.f32.mrf.mxu0
  %v459 = vadd.f32 %v419, %v458
  %v460 = vand.u32 %v296, 4294901760
  %v461 = vsub.f32 %v296, %v460
  %v462 = vand.u32 %v461, 4294901760
  %463 = vmatmul.f32.gmra.mxu0 %v462
  %v464 = vpop.f32.mrf.mxu0
  %v465 = vadd.f32 %v424, %v464
  %v466 = vand.u32 %v299, 4294901760
  %v467 = vsub.f32 %v299, %v466
  %v468 = vand.u32 %v467, 4294901760
  %469 = vmatmul.f32.gmra.mxu0 %v468
  %v470 = vpop.f32.mrf.mxu0
  %v471 = vadd.f32 %v429, %v470
  %472 = vdwg.mxu0
  %473 = vmatpush.msra.mxu0 0.0
  %474 = vmatpush.msra.mxu0 0.0
  %475 = vmatpush.msra.mxu0 0.0
  %476 = vmatpush.msra.mxu0 0.0
  %477 = vmatpush.msra.mxu0 0.0
  %478 = vmatpush.msra.mxu0 0.0
  %479 = vmatpush.msra.mxu0 0.0
  %480 = vmatpush.msra.mxu0 0.0
  %481 = vmatpush.msra.mxu0 0.0
  %482 = vmatpush.msra.mxu0 0.0
  %483 = vmatpush.msra.mxu0 0.0
  %484 = vmatpush.msra.mxu0 0.0
  %485 = vmatpush.msra.mxu0 0.0
  %486 = vmatpush.msra.mxu0 0.0
  %487 = vmatpush.msra.mxu0 0.0
  %v488 = vand.u32 %v302, 4294901760
  %v489 = vsub.f32 %v302, %v488
  %v490 = vand.u32 %v489, 4294901760
  %491 = vmatpush.msra.mxu0 %v490
  %v492 = vand.u32 %v290, 4294901760
  %493 = vmatmul.f32.gmra.mxu0 %v492
  %v494 = vpop.f32.mrf.mxu0
  %v495 = vadd.f32 %v453, %v494
  %v496 = vand.u32 %v293, 4294901760
  %497 = vmatmul.f32.gmra.mxu0 %v496
  %v498 = vpop.f32.mrf.mxu0
  %v499 = vadd.f32 %v459, %v498
  %v500 = vand.u32 %v296, 4294901760
  %501 = vmatmul.f32.gmra.mxu0 %v500
  %v502 = vpop.f32.mrf.mxu0
  %v503 = vadd.f32 %v465, %v502
  %v504 = vand.u32 %v299, 4294901760
  %505 = vmatmul.f32.gmra.mxu0 %v504
  %v506 = vpop.f32.mrf.mxu0
  %v507 = vadd.f32 %v471, %v506
  %508 = vdwg.mxu0
  %509 = vmatpush.msra.mxu0 0.0
  %510 = vmatpush.msra.mxu0 0.0
  %511 = vmatpush.msra.mxu0 0.0
  %512 = vmatpush.msra.mxu0 0.0
  %513 = vmatpush.msra.mxu0 0.0
  %514 = vmatpush.msra.mxu0 0.0
  %515 = vmatpush.msra.mxu0 0.0
  %516 = vmatpush.msra.mxu0 0.0
  %517 = vmatpush.msra.mxu0 0.0
  %518 = vmatpush.msra.mxu0 0.0
  %519 = vmatpush.msra.mxu0 0.0
  %520 = vmatpush.msra.mxu0 0.0
  %521 = vmatpush.msra.mxu0 0.0
  %522 = vmatpush.msra.mxu0 0.0
  %523 = vmatpush.msra.mxu0 0.0
  %v524 = vand.u32 %v302, 4294901760
  %525 = vmatpush.msra.mxu0 %v524
  %v526 = vand.u32 %v290, 4294901760
  %527 = vmatmul.f32.gmra.mxu0 %v526
  %v528 = vpop.f32.mrf.mxu0
  %v529 = vadd.f32 %v495, %v528
  %v530 = vand.u32 %v293, 4294901760
  %531 = vmatmul.f32.gmra.mxu0 %v530
  %v532 = vpop.f32.mrf.mxu0
  %v533 = vadd.f32 %v499, %v532
  %v534 = vand.u32 %v296, 4294901760
  %535 = vmatmul.f32.gmra.mxu0 %v534
  %v536 = vpop.f32.mrf.mxu0
  %v537 = vadd.f32 %v503, %v536
  %v538 = vand.u32 %v299, 4294901760
  %539 = vmatmul.f32.gmra.mxu0 %v538
  %v540 = vpop.f32.mrf.mxu0
  %v541 = vadd.f32 %v507, %v540
  %542 = vdwg.mxu0
  %v543 = vmul.f32 %v270, %v529
  %v544 = vmul.f32 %v274, %v533
  %v545 = vmul.f32 %v278, %v537
  %v546 = vmul.f32 %v282, %v541
  %v547 = vld [vmem:[%s5] sm:$0xff]
  %v548 = vld [vmem:[%s5 + $0x8] sm:$0xff]
  %v549 = vld [vmem:[%s5 + $0x10] sm:$0xff]
  %v550 = vld [vmem:[%s5 + $0x18] sm:$0xff]
  %v551 = vmul.f32 %v543, %v547
  %v552 = vmul.f32 %v544, %v548
  %v553 = vmul.f32 %v545, %v549
  %v554 = vmul.f32 %v546, %v550
  %v555 = vld [vmem:[%s2] sm:$0xff]
  %v556 = vld [vmem:[%s2 + $0x8] sm:$0x1]
  %vm557 = vcmask 261120
  %v559 = vsel %vm557, %v555, 0
  %v562 = vsel %vm557, %v556, 0
  %564 = vmatpush.msra.mxu0 0.0
  %565 = vmatpush.msra.mxu0 0.0
  %566 = vmatpush.msra.mxu0 0.0
  %567 = vmatpush.msra.mxu0 0.0
  %568 = vmatpush.msra.mxu0 0.0
  %569 = vmatpush.msra.mxu0 0.0
  %570 = vmatpush.msra.mxu0 0.0
  %571 = vmatpush.msra.mxu0 0.0
  %572 = vmatpush.msra.mxu0 0.0
  %573 = vmatpush.msra.mxu0 0.0
  %574 = vmatpush.msra.mxu0 0.0
  %575 = vmatpush.msra.mxu0 0.0
  %v576 = vand.u32 %v554, 4294901760
  %577 = vmatpush.msra.mxu0 %v576
  %v578 = vand.u32 %v553, 4294901760
  %579 = vmatpush.msra.mxu0 %v578
  %v580 = vand.u32 %v552, 4294901760
  %581 = vmatpush.msra.mxu0 %v580
  %v582 = vand.u32 %v551, 4294901760
  %583 = vmatpush.msra.mxu0 %v582
  %v584 = vand.u32 %v559, 4294901760
  %v585 = vsub.f32 %v559, %v584
  %v586 = vand.u32 %v585, 4294901760
  %v587 = vsub.f32 %v585, %v586
  %v588 = vand.u32 %v587, 4294901760
  %589 = vmatmul.f32.gmra.mxu0 %v588
  %v590 = vpop.f32.mrf.mxu0
  %v591 = vadd.f32 0.0, %v590
  %v592 = vand.u32 %v562, 4294901760
  %v593 = vsub.f32 %v562, %v592
  %v594 = vand.u32 %v593, 4294901760
  %v595 = vsub.f32 %v593, %v594
  %v596 = vand.u32 %v595, 4294901760
  %597 = vmatmul.f32.gmra.mxu0 %v596
  %v598 = vpop.f32.mrf.mxu0
  %v599 = vadd.f32 0.0, %v598
  %600 = vdwg.mxu0
  %601 = vmatpush.msra.mxu0 0.0
  %602 = vmatpush.msra.mxu0 0.0
  %603 = vmatpush.msra.mxu0 0.0
  %604 = vmatpush.msra.mxu0 0.0
  %605 = vmatpush.msra.mxu0 0.0
  %606 = vmatpush.msra.mxu0 0.0
  %607 = vmatpush.msra.mxu0 0.0
  %608 = vmatpush.msra.mxu0 0.0
  %609 = vmatpush.msra.mxu0 0.0
  %610 = vmatpush.msra.mxu0 0.0
  %611 = vmatpush.msra.mxu0 0.0
  %612 = vmatpush.msra.mxu0 0.0
  %v613 = vand.u32 %v554, 4294901760
  %v614 = vsub.f32 %v554, %v613
  %v615 = vand.u32 %v614, 4294901760
  %v616 = vsub.f32 %v614, %v615
  %v617 = vand.u32 %v616, 4294901760
  %618 = vmatpush.msra.mxu0 %v617
  %v619 = vand.u32 %v553, 4294901760
  %v620 = vsub.f32 %v553, %v619
  %v621 = vand.u32 %v620, 4294901760
  %v622 = vsub.f32 %v620, %v621
  %v623 = vand.u32 %v622, 4294901760
  %624 = vmatpush.msra.mxu0 %v623
  %v625 = vand.u32 %v552, 4294901760
  %v626 = vsub.f32 %v552, %v625
  %v627 = vand.u32 %v626, 4294901760
  %v628 = vsub.f32 %v626, %v627
  %v629 = vand.u32 %v628, 4294901760
  %630 = vmatpush.msra.mxu0 %v629
  %v631 = vand.u32 %v551, 4294901760
  %v632 = vsub.f32 %v551, %v631
  %v633 = vand.u32 %v632, 4294901760
  %v634 = vsub.f32 %v632, %v633
  %v635 = vand.u32 %v634, 4294901760
  %636 = vmatpush.msra.mxu0 %v635
  %v637 = vand.u32 %v559, 4294901760
  %638 = vmatmul.f32.gmra.mxu0 %v637
  %v639 = vpop.f32.mrf.mxu0
  %v640 = vadd.f32 %v591, %v639
  %v641 = vand.u32 %v562, 4294901760
  %642 = vmatmul.f32.gmra.mxu0 %v641
  %v643 = vpop.f32.mrf.mxu0
  %v644 = vadd.f32 %v599, %v643
  %645 = vdwg.mxu0
  %646 = vmatpush.msra.mxu0 0.0
  %647 = vmatpush.msra.mxu0 0.0
  %648 = vmatpush.msra.mxu0 0.0
  %649 = vmatpush.msra.mxu0 0.0
  %650 = vmatpush.msra.mxu0 0.0
  %651 = vmatpush.msra.mxu0 0.0
  %652 = vmatpush.msra.mxu0 0.0
  %653 = vmatpush.msra.mxu0 0.0
  %654 = vmatpush.msra.mxu0 0.0
  %655 = vmatpush.msra.mxu0 0.0
  %656 = vmatpush.msra.mxu0 0.0
  %657 = vmatpush.msra.mxu0 0.0
  %v658 = vand.u32 %v554, 4294901760
  %v659 = vsub.f32 %v554, %v658
  %660 = vmatpush.msra.mxu0 %v659
  %v661 = vand.u32 %v553, 4294901760
  %v662 = vsub.f32 %v553, %v661
  %663 = vmatpush.msra.mxu0 %v662
  %v664 = vand.u32 %v552, 4294901760
  %v665 = vsub.f32 %v552, %v664
  %666 = vmatpush.msra.mxu0 %v665
  %v667 = vand.u32 %v551, 4294901760
  %v668 = vsub.f32 %v551, %v667
  %669 = vmatpush.msra.mxu0 %v668
  %v670 = vand.u32 %v559, 4294901760
  %v671 = vsub.f32 %v559, %v670
  %672 = vmatmul.f32.gmra.mxu0 %v671
  %v673 = vpop.f32.mrf.mxu0
  %v674 = vadd.f32 %v640, %v673
  %v675 = vand.u32 %v562, 4294901760
  %v676 = vsub.f32 %v562, %v675
  %677 = vmatmul.f32.gmra.mxu0 %v676
  %v678 = vpop.f32.mrf.mxu0
  %v679 = vadd.f32 %v644, %v678
  %680 = vdwg.mxu0
  %681 = vmatpush.msra.mxu0 0.0
  %682 = vmatpush.msra.mxu0 0.0
  %683 = vmatpush.msra.mxu0 0.0
  %684 = vmatpush.msra.mxu0 0.0
  %685 = vmatpush.msra.mxu0 0.0
  %686 = vmatpush.msra.mxu0 0.0
  %687 = vmatpush.msra.mxu0 0.0
  %688 = vmatpush.msra.mxu0 0.0
  %689 = vmatpush.msra.mxu0 0.0
  %690 = vmatpush.msra.mxu0 0.0
  %691 = vmatpush.msra.mxu0 0.0
  %692 = vmatpush.msra.mxu0 0.0
  %v693 = vand.u32 %v554, 4294901760
  %694 = vmatpush.msra.mxu0 %v693
  %v695 = vand.u32 %v553, 4294901760
  %696 = vmatpush.msra.mxu0 %v695
  %v697 = vand.u32 %v552, 4294901760
  %698 = vmatpush.msra.mxu0 %v697
  %v699 = vand.u32 %v551, 4294901760
  %700 = vmatpush.msra.mxu0 %v699
  %v701 = vand.u32 %v559, 4294901760
  %v702 = vsub.f32 %v559, %v701
  %v703 = vand.u32 %v702, 4294901760
  %704 = vmatmul.f32.gmra.mxu0 %v703
  %v705 = vpop.f32.mrf.mxu0
  %v706 = vadd.f32 %v674, %v705
  %v707 = vand.u32 %v562, 4294901760
  %v708 = vsub.f32 %v562, %v707
  %v709 = vand.u32 %v708, 4294901760
  %710 = vmatmul.f32.gmra.mxu0 %v709
  %v711 = vpop.f32.mrf.mxu0
  %v712 = vadd.f32 %v679, %v711
  %713 = vdwg.mxu0
  %714 = vmatpush.msra.mxu0 0.0
  %715 = vmatpush.msra.mxu0 0.0
  %716 = vmatpush.msra.mxu0 0.0
  %717 = vmatpush.msra.mxu0 0.0
  %718 = vmatpush.msra.mxu0 0.0
  %719 = vmatpush.msra.mxu0 0.0
  %720 = vmatpush.msra.mxu0 0.0
  %721 = vmatpush.msra.mxu0 0.0
  %722 = vmatpush.msra.mxu0 0.0
  %723 = vmatpush.msra.mxu0 0.0
  %724 = vmatpush.msra.mxu0 0.0
  %725 = vmatpush.msra.mxu0 0.0
  %v726 = vand.u32 %v554, 4294901760
  %v727 = vsub.f32 %v554, %v726
  %v728 = vand.u32 %v727, 4294901760
  %729 = vmatpush.msra.mxu0 %v728
  %v730 = vand.u32 %v553, 4294901760
  %v731 = vsub.f32 %v553, %v730
  %v732 = vand.u32 %v731, 4294901760
  %733 = vmatpush.msra.mxu0 %v732
  %v734 = vand.u32 %v552, 4294901760
  %v735 = vsub.f32 %v552, %v734
  %v736 = vand.u32 %v735, 4294901760
  %737 = vmatpush.msra.mxu0 %v736
  %v738 = vand.u32 %v551, 4294901760
  %v739 = vsub.f32 %v551, %v738
  %v740 = vand.u32 %v739, 4294901760
  %741 = vmatpush.msra.mxu0 %v740
  %v742 = vand.u32 %v559, 4294901760
  %743 = vmatmul.f32.gmra.mxu0 %v742
  %v744 = vpop.f32.mrf.mxu0
  %v745 = vadd.f32 %v706, %v744
  %v746 = vand.u32 %v562, 4294901760
  %747 = vmatmul.f32.gmra.mxu0 %v746
  %v748 = vpop.f32.mrf.mxu0
  %v749 = vadd.f32 %v712, %v748
  %750 = vdwg.mxu0
  %751 = vmatpush.msra.mxu0 0.0
  %752 = vmatpush.msra.mxu0 0.0
  %753 = vmatpush.msra.mxu0 0.0
  %754 = vmatpush.msra.mxu0 0.0
  %755 = vmatpush.msra.mxu0 0.0
  %756 = vmatpush.msra.mxu0 0.0
  %757 = vmatpush.msra.mxu0 0.0
  %758 = vmatpush.msra.mxu0 0.0
  %759 = vmatpush.msra.mxu0 0.0
  %760 = vmatpush.msra.mxu0 0.0
  %761 = vmatpush.msra.mxu0 0.0
  %762 = vmatpush.msra.mxu0 0.0
  %v763 = vand.u32 %v554, 4294901760
  %764 = vmatpush.msra.mxu0 %v763
  %v765 = vand.u32 %v553, 4294901760
  %766 = vmatpush.msra.mxu0 %v765
  %v767 = vand.u32 %v552, 4294901760
  %768 = vmatpush.msra.mxu0 %v767
  %v769 = vand.u32 %v551, 4294901760
  %770 = vmatpush.msra.mxu0 %v769
  %v771 = vand.u32 %v559, 4294901760
  %772 = vmatmul.f32.gmra.mxu0 %v771
  %v773 = vpop.f32.mrf.mxu0
  %v774 = vadd.f32 %v745, %v773
  %v775 = vand.u32 %v562, 4294901760
  %776 = vmatmul.f32.gmra.mxu0 %v775
  %v777 = vpop.f32.mrf.mxu0
  %v778 = vadd.f32 %v749, %v777
  %779 = vdwg.mxu0
  %vm780 = vcmask 523264
  %781 = vst.msk [vmem:[%s6] sm:$0xff] %vm780, %v774
  %vm782 = vcmask 516096
  %783 = vst.msk [vmem:[%s6 + $0x8] sm:$0x1] %vm782, %v778
  // Predicated region
  $region26: #{forward.1} parent=0 // pred_check
    _
  $region27: #{forward.1} parent=0 // pred_check_branch
    %785 = sbr.rel (0) target = $region29
  $region28: #{forward.1} parent=0 // pred_region
    _
  $region29: #{forward.1} parent=0 // pred_fallthru
    _
  // Predicated region
  $region30: #{forward.1} parent=0 // pred_check
    _
  $region31: #{forward.1} parent=0 // pred_check_branch
    %787 = sbr.rel (0) target = $region33
  $region32: #{forward.1} parent=0 // pred_region
    _
  $region33: #{forward.1} parent=0 // pred_fallthru
    _

</llo_original>
